<compile_context>
chip_gen: v6e
topology: v6e:2x2x1
jax: 0.10.0
libtpu: 0.0.40
codegen_flags: <defaults>
</compile_context>

<pallas_src>
import functools

import numpy as np
import jax
import jax.numpy as jnp
from jax.experimental import pallas as pl
from jax.experimental.pallas import tpu as pltpu


# --------------------------------- kernel ------------------------------------

def _ca_kernel(x_ref, pool_ref, eh_ref, ew_ref, w1_ref, b1_ref, wh_ref, ww_ref,
               o_ref, *, H, W):
    """Fused coordinate-attention for one batch element.

    x_ref/o_ref : [1, C, H*W]   (pixel axis on lanes, lane-dense)
    pool_ref    : [H*W, H+W]    cols [0,H): mean over W per row h;
                                cols [H,H+W): mean over H per column w
    eh_ref      : [H, H*W]      0/1 expander: row h -> lanes of row h
    ew_ref      : [W, H*W]      0/1 expander: col w -> lanes of column w
    w1_ref      : [Cr, C]       conv_1x1 weight with BN scale folded in
    b1_ref      : [Cr, 1]       folded BN shift
    wh_ref/ww_ref: [C, Cr]      F_h / F_w weights (bias=False)
    """
    x = x_ref[0]                                            # [C, HW]
    xf = x.astype(jnp.float32)

    # coordinate pooling (AdaptiveAvgPool over one spatial axis each) as a
    # single MXU matmul against a constant matrix -> [C, H+W]
    pooled = jnp.dot(xf, pool_ref[...], preferred_element_type=jnp.float32)

    # conv_1x1 (C -> C//r, bias-free) with inference-BN folded in, then ReLU
    mid = jnp.dot(w1_ref[...], pooled,
                  preferred_element_type=jnp.float32) + b1_ref[...]
    mid = jnp.maximum(mid, 0.0)                              # [Cr, H+W]

    # F_h / F_w (C//r -> C) on the two halves, then sigmoid (EUP)
    s_h = jax.nn.sigmoid(jnp.dot(wh_ref[...], mid[:, :H],
                                 preferred_element_type=jnp.float32))  # [C, H]
    s_w = jax.nn.sigmoid(jnp.dot(ww_ref[...], mid[:, H:],
                                 preferred_element_type=jnp.float32))  # [C, W]

    # broadcast the gates back over the H*W pixel lanes with constant 0/1
    # expanders (keeps everything lane-dense, no in-kernel reshape/transpose)
    sh_full = jnp.dot(s_h, eh_ref[...], preferred_element_type=jnp.float32)
    sw_full = jnp.dot(s_w, ew_ref[...], preferred_element_type=jnp.float32)

    o_ref[0] = (xf * sh_full * sw_full).astype(o_ref.dtype)


# --------------------------------- wrapper ------------------------------------

def ca_block_pallas(x, params, *, eps=1e-5):
    """CA_Block forward.  x: [B, C, H, W].  Returns [B, C, H, W] in x.dtype."""
    B, C, H, W = x.shape
    Cr = params['w1'].shape[0]
    HW = H * W

    # -- tiny constant matrices (host side) -----------------------------------
    hw_idx = np.arange(HW)
    h_idx, w_idx = hw_idx // W, hw_idx % W
    pool = np.zeros((HW, H + W), np.float32)
    pool[hw_idx, h_idx] = 1.0 / W            # x_h: mean over W, indexed by h
    pool[hw_idx, H + w_idx] = 1.0 / H        # x_w: mean over H, indexed by w
    eh = np.zeros((H, HW), np.float32)
    eh[h_idx, hw_idx] = 1.0
    ew = np.zeros((W, HW), np.float32)
    ew[w_idx, hw_idx] = 1.0

    # -- fold inference BatchNorm into the first conv --------------------------
    # TODO(synk): training-mode BatchNorm (batch statistics) not implemented;
    # inference running-stats BN is used, folded into conv_1x1.
    scale = params['bn_gamma'] * jax.lax.rsqrt(params['bn_var'] + eps)   # [Cr]
    w1f = (params['w1'] * scale[:, None]).astype(jnp.float32)            # [Cr, C]
    b1f = (params['bn_beta'] - params['bn_mean'] * scale)[:, None]       # [Cr, 1]
    b1f = b1f.astype(jnp.float32)

    x3 = x.reshape(B, C, HW)   # free view of the contiguous NCHW buffer

    out = pl.pallas_call(
        functools.partial(_ca_kernel, H=H, W=W),
        out_shape=jax.ShapeDtypeStruct((B, C, HW), x.dtype),
        grid=(B,),
        in_specs=[
            pl.BlockSpec((1, C, HW), lambda b: (b, 0, 0)),      # x (tiled over B)
            pl.BlockSpec((HW, H + W), lambda b: (0, 0)),        # pool matrix (resident)
            pl.BlockSpec((H, HW), lambda b: (0, 0)),            # row expander (resident)
            pl.BlockSpec((W, HW), lambda b: (0, 0)),            # col expander (resident)
            pl.BlockSpec((Cr, C), lambda b: (0, 0)),            # conv1 weight (BN folded)
            pl.BlockSpec((Cr, 1), lambda b: (0, 0)),            # folded BN shift
            pl.BlockSpec((C, Cr), lambda b: (0, 0)),            # F_h weight
            pl.BlockSpec((C, Cr), lambda b: (0, 0)),            # F_w weight
        ],
        out_specs=pl.BlockSpec((1, C, HW), lambda b: (b, 0, 0)),
        compiler_params=pltpu.CompilerParams(
            dimension_semantics=("parallel",)),
    )(x3, jnp.asarray(pool), jnp.asarray(eh), jnp.asarray(ew),
      w1f, b1f,
      params['w_h'].astype(jnp.float32), params['w_w'].astype(jnp.float32))

    return out.reshape(B, C, H, W)


# ------------------------------ pure-JAX reference ----------------------------

def ca_block_ref(x, params, eps=1e-5):
    hp = jax.lax.Precision.HIGHEST
    B, C, H, W = x.shape
    xf = x.astype(jnp.float32)
    x_h = jnp.mean(xf, axis=3)                           # [B, C, H]
    x_w = jnp.mean(xf, axis=2)                           # [B, C, W]
    cat = jnp.concatenate([x_h, x_w], axis=-1)           # [B, C, H+W]
    mid = jnp.einsum('rc,bcn->brn', params['w1'], cat, precision=hp)
    scale = params['bn_gamma'] / jnp.sqrt(params['bn_var'] + eps)
    shift = params['bn_beta'] - params['bn_mean'] * scale
    mid = mid * scale[None, :, None] + shift[None, :, None]
    mid = jnp.maximum(mid, 0.0)
    s_h = jax.nn.sigmoid(
        jnp.einsum('cr,brh->bch', params['w_h'], mid[..., :H], precision=hp))
    s_w = jax.nn.sigmoid(
        jnp.einsum('cr,brw->bcw', params['w_w'], mid[..., H:], precision=hp))
    return (xf * s_h[:, :, :, None] * s_w[:, :, None, :]).astype(x.dtype)


# ----------------------------------- utils ------------------------------------

def make_params(key, channel, reduction):
    cr = channel // reduction
    ks = jax.random.split(key, 7)
    return dict(
        w1=0.2 * jax.random.normal(ks[0], (cr, channel), jnp.float32),
        w_h=0.2 * jax.random.normal(ks[1], (channel, cr), jnp.float32),
        w_w=0.2 * jax.random.normal(ks[2], (channel, cr), jnp.float32),
        bn_gamma=1.0 + 0.1 * jax.random.normal(ks[3], (cr,), jnp.float32),
        bn_beta=0.1 * jax.random.normal(ks[4], (cr,), jnp.float32),
        bn_mean=0.1 * jax.random.normal(ks[5], (cr,), jnp.float32),
        bn_var=1.0 + 0.1 * jnp.abs(jax.random.normal(ks[6], (cr,), jnp.float32)),
    )


# ------------------------------------ main -------------------------------------

if __name__ == "__main__":
    # channel must be >= reduction for channel//reduction >= 1
    B, C, H, W = 2, 32, 16, 16
    reduction = 8

    key = jax.random.PRNGKey(0)
    kx, kp = jax.random.split(key)
    x = jax.random.normal(kx, (B, C, H, W), jnp.float32)
    params = make_params(kp, C, reduction)

    fwd = jax.jit(ca_block_pallas)
    out = jax.block_until_ready(fwd(x, params))
    assert out.shape == (B, C, H, W), out.shape

    # f32 validation against the pure-JAX (HIGHEST-precision) reference
    ref = ca_block_ref(x, params)
    np.testing.assert_allclose(np.asarray(out), np.asarray(ref),
                               rtol=2e-2, atol=2e-2)

    # bf16 activation path (halves HBM traffic on v6e/v7x): smoke test
    out_bf16 = jax.block_until_ready(fwd(x.astype(jnp.bfloat16), params))
    assert out_bf16.shape == (B, C, H, W)
    assert bool(jnp.all(jnp.isfinite(out_bf16.astype(jnp.float32))))

    print("KERNEL_OK")
</pallas_src>

<mosaic_0001>
module attributes {stable_mosaic.version = 11 : i64} {
  func.func @_ca_kernel(%arg0: i32, %arg1: memref<1x32x256xf32, #tpu.memory_space<vmem>>, %arg2: memref<256x32xf32, #tpu.memory_space<vmem>>, %arg3: memref<16x256xf32, #tpu.memory_space<vmem>>, %arg4: memref<16x256xf32, #tpu.memory_space<vmem>>, %arg5: memref<4x32xf32, #tpu.memory_space<vmem>>, %arg6: memref<4x1xf32, #tpu.memory_space<vmem>>, %arg7: memref<32x4xf32, #tpu.memory_space<vmem>>, %arg8: memref<32x4xf32, #tpu.memory_space<vmem>>, %arg9: memref<1x32x256xf32, #tpu.memory_space<vmem>>) attributes {dimension_semantics = [#tpu.dimension_semantics<parallel>], iteration_bounds = array<i64: 2>, scalar_prefetch = 0 : i64, scratch_operands = 0 : i64, tpu.core_type = #tpu.core_type<tc>, window_params = [{transform_indices = @transform_0, window_bounds = array<i64: 1, 32, 256>}, {pipeline_mode = #tpu.pipeline_mode<synchronous>, transform_indices = @transform_1, window_bounds = array<i64: 256, 32>}, {pipeline_mode = #tpu.pipeline_mode<synchronous>, transform_indices = @transform_2, window_bounds = array<i64: 16, 256>}, {pipeline_mode = #tpu.pipeline_mode<synchronous>, transform_indices = @transform_3, window_bounds = array<i64: 16, 256>}, {pipeline_mode = #tpu.pipeline_mode<synchronous>, transform_indices = @transform_4, window_bounds = array<i64: 4, 32>}, {pipeline_mode = #tpu.pipeline_mode<synchronous>, transform_indices = @transform_5, window_bounds = array<i64: 4, 1>}, {pipeline_mode = #tpu.pipeline_mode<synchronous>, transform_indices = @transform_6, window_bounds = array<i64: 32, 4>}, {pipeline_mode = #tpu.pipeline_mode<synchronous>, transform_indices = @transform_7, window_bounds = array<i64: 32, 4>}, {transform_indices = @transform_8, window_bounds = array<i64: 1, 32, 256>}]} {
    %c0 = arith.constant 0 : index
    %c0_0 = arith.constant 0 : index
    %c0_1 = arith.constant 0 : index
    %0 = vector.load %arg1[%c0, %c0_0, %c0_1] : memref<1x32x256xf32, #tpu.memory_space<vmem>>, vector<1x32x256xf32>
    %1 = vector.shape_cast %0 : vector<1x32x256xf32> to vector<32x256xf32>
    %c0_2 = arith.constant 0 : index
    %c0_3 = arith.constant 0 : index
    %2 = vector.load %arg2[%c0_2, %c0_3] : memref<256x32xf32, #tpu.memory_space<vmem>>, vector<256x32xf32>
    %cst = arith.constant dense<0.000000e+00> : vector<32x32xf32>
    %3 = tpu.matmul %1, %2, %cst {dimension_numbers = #tpu.dot_dimension_numbers<[1], [0], [0], [1], [0, 0, 1, 1], [], []>} : vector<32x256xf32>, vector<256x32xf32>, vector<32x32xf32> -> vector<32x32xf32>
    %c0_4 = arith.constant 0 : index
    %c0_5 = arith.constant 0 : index
    %4 = vector.load %arg5[%c0_4, %c0_5] : memref<4x32xf32, #tpu.memory_space<vmem>>, vector<4x32xf32>
    %cst_6 = arith.constant dense<0.000000e+00> : vector<4x32xf32>
    %5 = tpu.matmul %4, %3, %cst_6 {dimension_numbers = #tpu.dot_dimension_numbers<[1], [0], [0], [1], [0, 0, 1, 1], [], []>} : vector<4x32xf32>, vector<32x32xf32>, vector<4x32xf32> -> vector<4x32xf32>
    %c0_7 = arith.constant 0 : index
    %c0_8 = arith.constant 0 : index
    %6 = vector.load %arg6[%c0_7, %c0_8] : memref<4x1xf32, #tpu.memory_space<vmem>>, vector<4x1xf32>
    %7 = vector.broadcast %6 : vector<4x1xf32> to vector<4x32xf32>
    %8 = arith.addf %5, %7 : vector<4x32xf32>
    %cst_9 = arith.constant 0.000000e+00 : f32
    %9 = vector.broadcast %cst_9 : f32 to vector<4x32xf32>
    %10 = arith.maximumf %8, %9 : vector<4x32xf32>
    %c0_10 = arith.constant 0 : index
    %c0_11 = arith.constant 0 : index
    %11 = vector.load %arg7[%c0_10, %c0_11] : memref<32x4xf32, #tpu.memory_space<vmem>>, vector<32x4xf32>
    %12 = vector.extract_strided_slice %10 {offsets = [0, 0], sizes = [4, 16], strides = [1, 1]} : vector<4x32xf32> to vector<4x16xf32>
    %cst_12 = arith.constant dense<0.000000e+00> : vector<32x16xf32>
    %13 = tpu.matmul %11, %12, %cst_12 {dimension_numbers = #tpu.dot_dimension_numbers<[1], [0], [0], [1], [0, 0, 1, 1], [], []>} : vector<32x4xf32>, vector<4x16xf32>, vector<32x16xf32> -> vector<32x16xf32>
    %14 = arith.negf %13 : vector<32x16xf32>
    %15 = math.exp %14 : vector<32x16xf32>
    %cst_13 = arith.constant 1.000000e+00 : f32
    %16 = vector.broadcast %cst_13 : f32 to vector<32x16xf32>
    %17 = arith.addf %16, %15 : vector<32x16xf32>
    %18 = arith.divf %16, %17 : vector<32x16xf32>
    %c0_14 = arith.constant 0 : index
    %c0_15 = arith.constant 0 : index
    %19 = vector.load %arg8[%c0_14, %c0_15] : memref<32x4xf32, #tpu.memory_space<vmem>>, vector<32x4xf32>
    %20 = vector.extract_strided_slice %10 {offsets = [0, 16], sizes = [4, 16], strides = [1, 1]} : vector<4x32xf32> to vector<4x16xf32>
    %cst_16 = arith.constant dense<0.000000e+00> : vector<32x16xf32>
    %21 = tpu.matmul %19, %20, %cst_16 {dimension_numbers = #tpu.dot_dimension_numbers<[1], [0], [0], [1], [0, 0, 1, 1], [], []>} : vector<32x4xf32>, vector<4x16xf32>, vector<32x16xf32> -> vector<32x16xf32>
    %22 = arith.negf %21 : vector<32x16xf32>
    %23 = math.exp %22 : vector<32x16xf32>
    %cst_17 = arith.constant 1.000000e+00 : f32
    %24 = vector.broadcast %cst_17 : f32 to vector<32x16xf32>
    %25 = arith.addf %24, %23 : vector<32x16xf32>
    %26 = arith.divf %24, %25 : vector<32x16xf32>
    %c0_18 = arith.constant 0 : index
    %c0_19 = arith.constant 0 : index
    %27 = vector.load %arg3[%c0_18, %c0_19] : memref<16x256xf32, #tpu.memory_space<vmem>>, vector<16x256xf32>
    %cst_20 = arith.constant dense<0.000000e+00> : vector<32x256xf32>
    %28 = tpu.matmul %18, %27, %cst_20 {dimension_numbers = #tpu.dot_dimension_numbers<[1], [0], [0], [1], [0, 0, 1, 1], [], []>} : vector<32x16xf32>, vector<16x256xf32>, vector<32x256xf32> -> vector<32x256xf32>
    %c0_21 = arith.constant 0 : index
    %c0_22 = arith.constant 0 : index
    %29 = vector.load %arg4[%c0_21, %c0_22] : memref<16x256xf32, #tpu.memory_space<vmem>>, vector<16x256xf32>
    %cst_23 = arith.constant dense<0.000000e+00> : vector<32x256xf32>
    %30 = tpu.matmul %26, %29, %cst_23 {dimension_numbers = #tpu.dot_dimension_numbers<[1], [0], [0], [1], [0, 0, 1, 1], [], []>} : vector<32x16xf32>, vector<16x256xf32>, vector<32x256xf32> -> vector<32x256xf32>
    %31 = arith.mulf %1, %28 : vector<32x256xf32>
    %32 = arith.mulf %31, %30 : vector<32x256xf32>
    %c0_24 = arith.constant 0 : index
    %c0_25 = arith.constant 0 : index
    %c0_26 = arith.constant 0 : index
    %33 = vector.load %arg9[%c0_24, %c0_25, %c0_26] : memref<1x32x256xf32, #tpu.memory_space<vmem>>, vector<1x32x256xf32>
    %34 = vector.shape_cast %33 : vector<1x32x256xf32> to vector<32x256xf32>
    %35 = vector.shape_cast %32 : vector<32x256xf32> to vector<1x32x256xf32>
    tpu.vector_store %arg9[%c0_24, %c0_25, %c0_26], %35 {strides = array<i32>} : memref<1x32x256xf32, #tpu.memory_space<vmem>>, vector<1x32x256xf32>,
    return
  }
  func.func @transform_0(%arg0: i32) -> (i32, i32, i32) {
    %c0_i32 = arith.constant 0 : i32
    %c0_i32_0 = arith.constant 0 : i32
    %c0_i32_1 = arith.constant 0 : i32
    return %arg0, %c0_i32, %c0_i32_0 : i32, i32, i32
  }
  func.func @transform_1(%arg0: i32) -> (i32, i32) {
    %c0_i32 = arith.constant 0 : i32
    %c0_i32_0 = arith.constant 0 : i32
    %c0_i32_1 = arith.constant 0 : i32
    return %c0_i32, %c0_i32_0 : i32, i32
  }
  func.func @transform_2(%arg0: i32) -> (i32, i32) {
    %c0_i32 = arith.constant 0 : i32
    %c0_i32_0 = arith.constant 0 : i32
    %c0_i32_1 = arith.constant 0 : i32
    return %c0_i32, %c0_i32_0 : i32, i32
  }
  func.func @transform_3(%arg0: i32) -> (i32, i32) {
    %c0_i32 = arith.constant 0 : i32
    %c0_i32_0 = arith.constant 0 : i32
    %c0_i32_1 = arith.constant 0 : i32
    return %c0_i32, %c0_i32_0 : i32, i32
  }
  func.func @transform_4(%arg0: i32) -> (i32, i32) {
    %c0_i32 = arith.constant 0 : i32
    %c0_i32_0 = arith.constant 0 : i32
    %c0_i32_1 = arith.constant 0 : i32
    return %c0_i32, %c0_i32_0 : i32, i32
  }
  func.func @transform_5(%arg0: i32) -> (i32, i32) {
    %c0_i32 = arith.constant 0 : i32
    %c0_i32_0 = arith.constant 0 : i32
    %c0_i32_1 = arith.constant 0 : i32
    return %c0_i32, %c0_i32_0 : i32, i32
  }
  func.func @transform_6(%arg0: i32) -> (i32, i32) {
    %c0_i32 = arith.constant 0 : i32
    %c0_i32_0 = arith.constant 0 : i32
    %c0_i32_1 = arith.constant 0 : i32
    return %c0_i32, %c0_i32_0 : i32, i32
  }
  func.func @transform_7(%arg0: i32) -> (i32, i32) {
    %c0_i32 = arith.constant 0 : i32
    %c0_i32_0 = arith.constant 0 : i32
    %c0_i32_1 = arith.constant 0 : i32
    return %c0_i32, %c0_i32_0 : i32, i32
  }
  func.func @transform_8(%arg0: i32) -> (i32, i32, i32) {
    %c0_i32 = arith.constant 0 : i32
    %c0_i32_0 = arith.constant 0 : i32
    %c0_i32_1 = arith.constant 0 : i32
    return %arg0, %c0_i32, %c0_i32_0 : i32, i32, i32
  }
}

</mosaic_0001>

<llo_original>
// kernel: ca_block_pallas.1
$region0: #{ca_block_pallas.1}
  #allocation0 [shape = 'u32[]', space=smem, size = 0x4, offset = 0x4, fixed_abs, tag = 'smem constant byte address 0x4 - core index']
  #allocation1 [shape = 'u32[144,128]{1,0:T(1,128)}', space=vmem, size = 0x12000, scoped, tag = 'internal scratch']
  %s0 = inlined_call_operand.vmem [shape: f32[2,32,256], index: 0, kind: input, shape index: {}]
  %s1 = inlined_call_operand.vmem [shape: f32[256,32], index: 1, kind: input, shape index: {}]
  %s2 = inlined_call_operand.vmem [shape: f32[16,256], index: 2, kind: input, shape index: {}]
  %s3 = inlined_call_operand.vmem [shape: f32[16,256], index: 3, kind: input, shape index: {}]
  %s4 = inlined_call_operand.vmem [shape: f32[4,32], index: 4, kind: input, shape index: {}]
  %s5 = inlined_call_operand.vmem [shape: f32[4,1], index: 5, kind: input, shape index: {}]
  %s6 = inlined_call_operand.vmem [shape: f32[32,4], index: 6, kind: input, shape index: {}]
  %s7 = inlined_call_operand.vmem [shape: f32[32,4], index: 7, kind: input, shape index: {}]
  %s8 = inlined_call_operand.vmem [shape: f32[2,32,256], index: 8, kind: output, shape index: {}]
  %s9 = sld [smem:[#allocation0]]
  $region65: #{ca_block_pallas.1} parent=0
    _
  %s11 = ssub.s32 1, %s9
  %s12 = scalar_select 0, %s11, %s9
  loop: start=0, step=1, limit=4
  $region2: #{ca_block_pallas.1} parent=0 // loop_pre_header
    _
  $region3: #{ca_block_pallas.1} parent=0 // loop_header
    %s14 = sphi 0, %s18
    %p15 = scmp.ge.s32.totalorder %s14, 4
    %s24 = sphi 0, %s26
    %s27 = sphi 0, %s24
    %s28 = sphi 0, %s27
    %s44 = sphi 0, %s28
    %s48 = sphi 0, %s48
    %s50 = sphi 0, %s48
    %s51 = sphi 0, %s50
    %s65 = sphi 0, %s51
    %s69 = sphi 0, %s69
    %s71 = sphi 0, %s69
    %s72 = sphi 0, %s71
    %s86 = sphi 0, %s72
    %s90 = sphi 0, %s90
    %s92 = sphi 0, %s90
    %s93 = sphi 0, %s92
    %s107 = sphi 0, %s93
    %s111 = sphi 0, %s111
    %s113 = sphi 0, %s111
    %s114 = sphi 0, %s113
    %s128 = sphi 0, %s114
    %s132 = sphi 0, %s132
    %s134 = sphi 0, %s132
    %s135 = sphi 0, %s134
    %s149 = sphi 0, %s135
    %s153 = sphi 0, %s153
    %s155 = sphi 0, %s153
    %s156 = sphi 0, %s155
    %s170 = sphi 0, %s156
    %s174 = sphi 0, %s174
    %s176 = sphi 0, %s174
    %s177 = sphi 0, %s176
    %s191 = sphi 0, %s177
    %s197 = sphi 0, %s199
    %s200 = sphi 0, %s197
    %s201 = sphi 0, %s200
    %s217 = sphi 0, %s201
  $region4: #{ca_block_pallas.1} parent=0 // loop_header_branch
    %17 = sbr.rel (%p15) target = $region8
  $region5: #{ca_block_pallas.1} parent=0 // loop_body
    %s19 = ssub.s32 %s14, 1
    %s20 = ssub.s32 %s14, 2
    %s21 = sadd.s32 %s14, 1
    %s22 = ssub.s32 %s14, %s21
    %p23 = scmp.eq.s32.totalorder %s22, 0
    %s25 = sadd.s32 %s24, 1
    %s26 = scalar_select %p23, %s24, %s25
    %p29 = pneg %p23
    %p30 = scmp.eq.s32.totalorder %s14, 1
    %p31 = por %p29, %p30
    %p32 = scmp.ne.s32.totalorder %s24, %s27
    %p33 = scmp.eq.s32.totalorder %s14, 0
    %p34 = por %p32, %p33
    %p35 = scmp.ne.s32.totalorder %s24, %s27
    %p36 = scmp.eq.s32.totalorder %s19, 1
    %p37 = por %p35, %p36
    %p38 = scmp.ne.s32.totalorder %s27, %s28
    %p39 = scmp.eq.s32.totalorder %s19, 0
    %p40 = por %p38, %p39
    %p41 = scmp.ne.s32.totalorder %s27, %s28
    %p42 = scmp.eq.s32.totalorder %s20, 1
    %p43 = por %p41, %p42
    %p45 = scmp.ne.s32.totalorder %s28, %s44
    %p46 = scmp.eq.s32.totalorder %s20, 0
    %p47 = por %p45, %p46
    %s49 = sadd.s32 %s48, 1
    %p52 = scmp.eq.s32.totalorder %s14, 1
    %p53 = scmp.ne.s32.totalorder %s48, %s50
    %p54 = scmp.eq.s32.totalorder %s14, 0
    %p55 = por %p53, %p54
    %p56 = scmp.ne.s32.totalorder %s48, %s50
    %p57 = scmp.eq.s32.totalorder %s19, 1
    %p58 = por %p56, %p57
    %p59 = scmp.ne.s32.totalorder %s50, %s51
    %p60 = scmp.eq.s32.totalorder %s19, 0
    %p61 = por %p59, %p60
    %p62 = scmp.ne.s32.totalorder %s50, %s51
    %p63 = scmp.eq.s32.totalorder %s20, 1
    %p64 = por %p62, %p63
    %p66 = scmp.ne.s32.totalorder %s51, %s65
    %p67 = scmp.eq.s32.totalorder %s20, 0
    %p68 = por %p66, %p67
    %s70 = sadd.s32 %s69, 1
    %p73 = scmp.eq.s32.totalorder %s14, 1
    %p74 = scmp.ne.s32.totalorder %s69, %s71
    %p75 = scmp.eq.s32.totalorder %s14, 0
    %p76 = por %p74, %p75
    %p77 = scmp.ne.s32.totalorder %s69, %s71
    %p78 = scmp.eq.s32.totalorder %s19, 1
    %p79 = por %p77, %p78
    %p80 = scmp.ne.s32.totalorder %s71, %s72
    %p81 = scmp.eq.s32.totalorder %s19, 0
    %p82 = por %p80, %p81
    %p83 = scmp.ne.s32.totalorder %s71, %s72
    %p84 = scmp.eq.s32.totalorder %s20, 1
    %p85 = por %p83, %p84
    %p87 = scmp.ne.s32.totalorder %s72, %s86
    %p88 = scmp.eq.s32.totalorder %s20, 0
    %p89 = por %p87, %p88
    %s91 = sadd.s32 %s90, 1
    %p94 = scmp.eq.s32.totalorder %s14, 1
    %p95 = scmp.ne.s32.totalorder %s90, %s92
    %p96 = scmp.eq.s32.totalorder %s14, 0
    %p97 = por %p95, %p96
    %p98 = scmp.ne.s32.totalorder %s90, %s92
    %p99 = scmp.eq.s32.totalorder %s19, 1
    %p100 = por %p98, %p99
    %p101 = scmp.ne.s32.totalorder %s92, %s93
    %p102 = scmp.eq.s32.totalorder %s19, 0
    %p103 = por %p101, %p102
    %p104 = scmp.ne.s32.totalorder %s92, %s93
    %p105 = scmp.eq.s32.totalorder %s20, 1
    %p106 = por %p104, %p105
    %p108 = scmp.ne.s32.totalorder %s93, %s107
    %p109 = scmp.eq.s32.totalorder %s20, 0
    %p110 = por %p108, %p109
    %s112 = sadd.s32 %s111, 1
    %p115 = scmp.eq.s32.totalorder %s14, 1
    %p116 = scmp.ne.s32.totalorder %s111, %s113
    %p117 = scmp.eq.s32.totalorder %s14, 0
    %p118 = por %p116, %p117
    %p119 = scmp.ne.s32.totalorder %s111, %s113
    %p120 = scmp.eq.s32.totalorder %s19, 1
    %p121 = por %p119, %p120
    %p122 = scmp.ne.s32.totalorder %s113, %s114
    %p123 = scmp.eq.s32.totalorder %s19, 0
    %p124 = por %p122, %p123
    %p125 = scmp.ne.s32.totalorder %s113, %s114
    %p126 = scmp.eq.s32.totalorder %s20, 1
    %p127 = por %p125, %p126
    %p129 = scmp.ne.s32.totalorder %s114, %s128
    %p130 = scmp.eq.s32.totalorder %s20, 0
    %p131 = por %p129, %p130
    %s133 = sadd.s32 %s132, 1
    %p136 = scmp.eq.s32.totalorder %s14, 1
    %p137 = scmp.ne.s32.totalorder %s132, %s134
    %p138 = scmp.eq.s32.totalorder %s14, 0
    %p139 = por %p137, %p138
    %p140 = scmp.ne.s32.totalorder %s132, %s134
    %p141 = scmp.eq.s32.totalorder %s19, 1
    %p142 = por %p140, %p141
    %p143 = scmp.ne.s32.totalorder %s134, %s135
    %p144 = scmp.eq.s32.totalorder %s19, 0
    %p145 = por %p143, %p144
    %p146 = scmp.ne.s32.totalorder %s134, %s135
    %p147 = scmp.eq.s32.totalorder %s20, 1
    %p148 = por %p146, %p147
    %p150 = scmp.ne.s32.totalorder %s135, %s149
    %p151 = scmp.eq.s32.totalorder %s20, 0
    %p152 = por %p150, %p151
    %s154 = sadd.s32 %s153, 1
    %p157 = scmp.eq.s32.totalorder %s14, 1
    %p158 = scmp.ne.s32.totalorder %s153, %s155
    %p159 = scmp.eq.s32.totalorder %s14, 0
    %p160 = por %p158, %p159
    %p161 = scmp.ne.s32.totalorder %s153, %s155
    %p162 = scmp.eq.s32.totalorder %s19, 1
    %p163 = por %p161, %p162
    %p164 = scmp.ne.s32.totalorder %s155, %s156
    %p165 = scmp.eq.s32.totalorder %s19, 0
    %p166 = por %p164, %p165
    %p167 = scmp.ne.s32.totalorder %s155, %s156
    %p168 = scmp.eq.s32.totalorder %s20, 1
    %p169 = por %p167, %p168
    %p171 = scmp.ne.s32.totalorder %s156, %s170
    %p172 = scmp.eq.s32.totalorder %s20, 0
    %p173 = por %p171, %p172
    %s175 = sadd.s32 %s174, 1
    %p178 = scmp.eq.s32.totalorder %s14, 1
    %p179 = scmp.ne.s32.totalorder %s174, %s176
    %p180 = scmp.eq.s32.totalorder %s14, 0
    %p181 = por %p179, %p180
    %p182 = scmp.ne.s32.totalorder %s174, %s176
    %p183 = scmp.eq.s32.totalorder %s19, 1
    %p184 = por %p182, %p183
    %p185 = scmp.ne.s32.totalorder %s176, %s177
    %p186 = scmp.eq.s32.totalorder %s19, 0
    %p187 = por %p185, %p186
    %p188 = scmp.ne.s32.totalorder %s176, %s177
    %p189 = scmp.eq.s32.totalorder %s20, 1
    %p190 = por %p188, %p189
    %p192 = scmp.ne.s32.totalorder %s177, %s191
    %p193 = scmp.eq.s32.totalorder %s20, 0
    %p194 = por %p192, %p193
    %s195 = ssub.s32 %s14, %s21
    %p196 = scmp.eq.s32.totalorder %s195, 0
    %s198 = sadd.s32 %s197, 1
    %s199 = scalar_select %p196, %s197, %s198
    %p202 = pneg %p196
    %p203 = scmp.eq.s32.totalorder %s14, 1
    %p204 = por %p202, %p203
    %p205 = scmp.ne.s32.totalorder %s197, %s200
    %p206 = scmp.eq.s32.totalorder %s14, 0
    %p207 = por %p205, %p206
    %p208 = scmp.ne.s32.totalorder %s197, %s200
    %p209 = scmp.eq.s32.totalorder %s19, 1
    %p210 = por %p208, %p209
    %p211 = scmp.ne.s32.totalorder %s200, %s201
    %p212 = scmp.eq.s32.totalorder %s19, 0
    %p213 = por %p211, %p212
    %p214 = scmp.ne.s32.totalorder %s200, %s201
    %p215 = scmp.eq.s32.totalorder %s20, 1
    %p216 = por %p214, %p215
    %p218 = scmp.ne.s32.totalorder %s201, %s217
    %p219 = scmp.eq.s32.totalorder %s20, 0
    %p220 = por %p218, %p219
    %p221 = scmp.le.s32.totalorder 1, %s14
    %p222 = scmp.lt.s32.totalorder %s14, 3
    %p223 = pnand %p221, %p222
    %p224 = pneg %p223
    // Predicated region
    $region9: #{ca_block_pallas.1} parent=5 // pred_check
      _
    $region10: #{ca_block_pallas.1} parent=5 // pred_check_branch
      %226 = sbr.rel (%p223) target = $region12
    $region11: #{ca_block_pallas.1} parent=5 // pred_region
      %s227 = ssub.s32 %s14, 1
      // Predicated region
      $region13: #{ca_block_pallas.1} parent=11 // pred_check
        %p228 = pneg %p61
      $region14: #{ca_block_pallas.1} parent=11 // pred_check_branch
        %230 = sbr.rel (%p228) target = $region16
      $region15: #{ca_block_pallas.1} parent=11 // pred_region
        _
      $region16: #{ca_block_pallas.1} parent=11 // pred_fallthru
        _
      // Predicated region
      $region17: #{ca_block_pallas.1} parent=11 // pred_check
        %p231 = pneg %p82
      $region18: #{ca_block_pallas.1} parent=11 // pred_check_branch
        %233 = sbr.rel (%p231) target = $region20
      $region19: #{ca_block_pallas.1} parent=11 // pred_region
        _
      $region20: #{ca_block_pallas.1} parent=11 // pred_fallthru
        _
      // Predicated region
      $region21: #{ca_block_pallas.1} parent=11 // pred_check
        %p234 = pneg %p103
      $region22: #{ca_block_pallas.1} parent=11 // pred_check_branch
        %236 = sbr.rel (%p234) target = $region24
      $region23: #{ca_block_pallas.1} parent=11 // pred_region
        _
      $region24: #{ca_block_pallas.1} parent=11 // pred_fallthru
        _
      // Predicated region
      $region25: #{ca_block_pallas.1} parent=11 // pred_check
        %p237 = pneg %p124
      $region26: #{ca_block_pallas.1} parent=11 // pred_check_branch
        %239 = sbr.rel (%p237) target = $region28
      $region27: #{ca_block_pallas.1} parent=11 // pred_region
        _
      $region28: #{ca_block_pallas.1} parent=11 // pred_fallthru
        _
      // Predicated region
      $region29: #{ca_block_pallas.1} parent=11 // pred_check
        %p240 = pneg %p145
      $region30: #{ca_block_pallas.1} parent=11 // pred_check_branch
        %242 = sbr.rel (%p240) target = $region32
      $region31: #{ca_block_pallas.1} parent=11 // pred_region
        _
      $region32: #{ca_block_pallas.1} parent=11 // pred_fallthru
        _
      // Predicated region
      $region33: #{ca_block_pallas.1} parent=11 // pred_check
        %p243 = pneg %p166
      $region34: #{ca_block_pallas.1} parent=11 // pred_check_branch
        %245 = sbr.rel (%p243) target = $region36
      $region35: #{ca_block_pallas.1} parent=11 // pred_region
        _
      $region36: #{ca_block_pallas.1} parent=11 // pred_fallthru
        _
      // Predicated region
      $region37: #{ca_block_pallas.1} parent=11 // pred_check
        %p246 = pneg %p187
      $region38: #{ca_block_pallas.1} parent=11 // pred_check_branch
        %248 = sbr.rel (%p246) target = $region40
      $region39: #{ca_block_pallas.1} parent=11 // pred_region
        _
      $region40: #{ca_block_pallas.1} parent=11 // pred_fallthru
        _
    $region12: #{ca_block_pallas.1} parent=5 // pred_fallthru
      _
    %p249 = scmp.lt.s32.totalorder %s14, 2
    // Predicated region
    $region41: #{ca_block_pallas.1} parent=5 // pred_check
      %p250 = pneg %p249
    $region42: #{ca_block_pallas.1} parent=5 // pred_check_branch
      %252 = sbr.rel (%p250) target = $region44
    $region43: #{ca_block_pallas.1} parent=5 // pred_region
      // Predicated region
      $region45: #{ca_block_pallas.1} parent=43 // pred_check
        %p253 = pneg %p34
      $region46: #{ca_block_pallas.1} parent=43 // pred_check_branch
        %255 = sbr.rel (%p253) target = $region48
      $region47: #{ca_block_pallas.1} parent=43 // pred_region
        %p256 = scmp.lt.s32.totalorder %s14, 1
        %s257 = scalar_select %p256, %s14, 1
        %s258 = smul.addr %s257, 8
        %s259 = smul.addr %s258, 8
        %s260 = scalar_lea.vmem %s0, %s259
      $region48: #{ca_block_pallas.1} parent=43 // pred_fallthru
        _
    $region44: #{ca_block_pallas.1} parent=5 // pred_fallthru
      _
    %p261 = scmp.le.s32.totalorder 1, %s14
    %p262 = scmp.lt.s32.totalorder %s14, 3
    %p263 = pnand %p261, %p262
    %p264 = pneg %p263
    // Predicated region
    $region49: #{ca_block_pallas.1} parent=5 // pred_check
      _
    $region50: #{ca_block_pallas.1} parent=5 // pred_check_branch
      %266 = sbr.rel (%p263) target = $region52
    $region51: #{ca_block_pallas.1} parent=5 // pred_region
      %s267 = ssub.s32 %s14, 1
      %p268 = scmp.lt.s32.totalorder %s19, 1
      %s269 = scalar_select %p268, %s19, 1
      %s270 = smul.addr %s269, 8
      %s271 = smul.addr %s270, 8
      %s272 = scalar_lea.vmem %s0, %s271
      %p273 = pneg %p40
      %p274 = pneg %p37
      %p275 = pneg %p61
      %p276 = pneg %p58
      %p277 = pneg %p82
      %p278 = pneg %p79
      %p279 = pneg %p103
      %p280 = pneg %p100
      %p281 = pneg %p124
      %p282 = pneg %p121
      %p283 = pneg %p145
      %p284 = pneg %p142
      %p285 = pneg %p166
      %p286 = pneg %p163
      %p287 = pneg %p187
      %p288 = pneg %p184
      %p289 = pneg %p213
      %p290 = pneg %p210
      %p291 = scmp.lt.s32.totalorder %s19, 1
      %s292 = scalar_select %p291, %s19, 1
      %s293 = smul.addr %s292, 8
      %s294 = smul.addr %s293, 8
      %s295 = scalar_lea.vmem %s8, %s294
      %p296 = scmp.lt.s32.totalorder %s19, 1
      %s297 = scalar_select %p296, %s19, 1
      %s298 = smul.addr %s297, 8
      %s299 = smul.addr %s298, 8
      %s300 = scalar_lea.vmem %s0, %s299
      %p301 = scmp.lt.s32.totalorder %s19, 1
      %s302 = scalar_select %p301, %s19, 1
      %s303 = smul.addr %s302, 8
      %s304 = smul.addr %s303, 8
      %s305 = scalar_lea.vmem %s8, %s304
      %v306 = vld [vmem:[%s300] sm:$0xff]
      %v307 = vld [vmem:[%s300 + $0x8] sm:$0xff]
      %v308 = vld [vmem:[%s300 + $0x10] sm:$0xff]
      %v309 = vld [vmem:[%s300 + $0x18] sm:$0xff]
      %v310 = vld [vmem:[%s300 + $0x20] sm:$0xff]
      %v311 = vld [vmem:[%s300 + $0x28] sm:$0xff]
      %v312 = vld [vmem:[%s300 + $0x30] sm:$0xff]
      %v313 = vld [vmem:[%s300 + $0x38] sm:$0xff]
      %v314 = vld [vmem:[%s1] sm:$0xff]
      %v315 = vld [vmem:[%s1 + $0x8] sm:$0xff]
      %v316 = vld [vmem:[%s1 + $0x10] sm:$0xff]
      %v317 = vld [vmem:[%s1 + $0x18] sm:$0xff]
      %v318 = vld [vmem:[%s1 + $0x20] sm:$0xff]
      %v319 = vld [vmem:[%s1 + $0x28] sm:$0xff]
      %v320 = vld [vmem:[%s1 + $0x30] sm:$0xff]
      %v321 = vld [vmem:[%s1 + $0x38] sm:$0xff]
      %v322 = vld [vmem:[%s1 + $0x40] sm:$0xff]
      %v323 = vld [vmem:[%s1 + $0x48] sm:$0xff]
      %v324 = vld [vmem:[%s1 + $0x50] sm:$0xff]
      %v325 = vld [vmem:[%s1 + $0x58] sm:$0xff]
      %v326 = vld [vmem:[%s1 + $0x60] sm:$0xff]
      %v327 = vld [vmem:[%s1 + $0x68] sm:$0xff]
      %v328 = vld [vmem:[%s1 + $0x70] sm:$0xff]
      %v329 = vld [vmem:[%s1 + $0x78] sm:$0xff]
      %v330 = vld [vmem:[%s1 + $0x80] sm:$0xff]
      %v331 = vld [vmem:[%s1 + $0x88] sm:$0xff]
      %v332 = vld [vmem:[%s1 + $0x90] sm:$0xff]
      %v333 = vld [vmem:[%s1 + $0x98] sm:$0xff]
      %v334 = vld [vmem:[%s1 + $0xa0] sm:$0xff]
      %v335 = vld [vmem:[%s1 + $0xa8] sm:$0xff]
      %v336 = vld [vmem:[%s1 + $0xb0] sm:$0xff]
      %v337 = vld [vmem:[%s1 + $0xb8] sm:$0xff]
      %v338 = vld [vmem:[%s1 + $0xc0] sm:$0xff]
      %v339 = vld [vmem:[%s1 + $0xc8] sm:$0xff]
      %v340 = vld [vmem:[%s1 + $0xd0] sm:$0xff]
      %v341 = vld [vmem:[%s1 + $0xd8] sm:$0xff]
      %v342 = vld [vmem:[%s1 + $0xe0] sm:$0xff]
      %v343 = vld [vmem:[%s1 + $0xe8] sm:$0xff]
      %v344 = vld [vmem:[%s1 + $0xf0] sm:$0xff]
      %v345 = vld [vmem:[%s1 + $0xf8] sm:$0xff]
      %346 = vmatprep.subr.mxu0 0.0
      %347 = vmatpush1.msra.mxu0 %v329
      %348 = vmatprep.subr.mxu0 0.0
      %349 = vmatpush1.msra.mxu0 %v328
      %350 = vmatprep.subr.mxu0 0.0
      %351 = vmatpush1.msra.mxu0 %v327
      %352 = vmatprep.subr.mxu0 0.0
      %353 = vmatpush1.msra.mxu0 %v326
      %354 = vmatprep.subr.mxu0 0.0
      %355 = vmatpush1.msra.mxu0 %v325
      %356 = vmatprep.subr.mxu0 0.0
      %357 = vmatpush1.msra.mxu0 %v324
      %358 = vmatprep.subr.mxu0 0.0
      %359 = vmatpush1.msra.mxu0 %v323
      %360 = vmatprep.subr.mxu0 0.0
      %361 = vmatpush1.msra.mxu0 %v322
      %362 = vmatprep.subr.mxu0 0.0
      %363 = vmatpush1.msra.mxu0 %v321
      %364 = vmatprep.subr.mxu0 0.0
      %365 = vmatpush1.msra.mxu0 %v320
      %366 = vmatprep.subr.mxu0 0.0
      %367 = vmatpush1.msra.mxu0 %v319
      %368 = vmatprep.subr.mxu0 0.0
      %369 = vmatpush1.msra.mxu0 %v318
      %370 = vmatprep.subr.mxu0 0.0
      %371 = vmatpush1.msra.mxu0 %v317
      %372 = vmatprep.subr.mxu0 0.0
      %373 = vmatpush1.msra.mxu0 %v316
      %374 = vmatprep.subr.mxu0 0.0
      %375 = vmatpush1.msra.mxu0 %v315
      %376 = vmatprep.subr.mxu0 0.0
      %377 = vmatpush1.msra.mxu0 %v314
      %378 = vmatprep.subr.mxu0 0.0
      %379 = vmatpush2.msra.mxu0 %v345
      %380 = vmatprep.subr.mxu0 0.0
      %381 = vmatpush2.msra.mxu0 %v344
      %382 = vmatprep.subr.mxu0 0.0
      %383 = vmatpush2.msra.mxu0 %v343
      %384 = vmatprep.subr.mxu0 0.0
      %385 = vmatpush2.msra.mxu0 %v342
      %386 = vmatprep.subr.mxu0 0.0
      %387 = vmatpush2.msra.mxu0 %v341
      %388 = vmatprep.subr.mxu0 0.0
      %389 = vmatpush2.msra.mxu0 %v340
      %390 = vmatprep.subr.mxu0 0.0
      %391 = vmatpush2.msra.mxu0 %v339
      %392 = vmatprep.subr.mxu0 0.0
      %393 = vmatpush2.msra.mxu0 %v338
      %394 = vmatprep.subr.mxu0 0.0
      %395 = vmatpush2.msra.mxu0 %v337
      %396 = vmatprep.subr.mxu0 0.0
      %397 = vmatpush2.msra.mxu0 %v336
      %398 = vmatprep.subr.mxu0 0.0
      %399 = vmatpush2.msra.mxu0 %v335
      %400 = vmatprep.subr.mxu0 0.0
      %401 = vmatpush2.msra.mxu0 %v334
      %402 = vmatprep.subr.mxu0 0.0
      %403 = vmatpush2.msra.mxu0 %v333
      %404 = vmatprep.subr.mxu0 0.0
      %405 = vmatpush2.msra.mxu0 %v332
      %406 = vmatprep.subr.mxu0 0.0
      %407 = vmatpush2.msra.mxu0 %v331
      %408 = vmatprep.subr.mxu0 0.0
      %409 = vmatpush2.msra.mxu0 %v330
      %410 = vmatprep.mubr.f32.mxu0 %v307
      %411 = vmatmul.mubr.f32.gmra.mxu0 %v306
      %v412 = vpop.f32.mrf.mxu0
      %v413 = vadd.f32 0.0, %v412
      %v414 = vpop.f32.mrf.mxu0
      %415 = vmatprep.mubr.f32.mxu0 %v309
      %416 = vmatmul.mubr.f32.gmra.mxu0 %v308
      %v417 = vpop.f32.mrf.mxu0
      %v418 = vadd.f32 0.0, %v417
      %v419 = vpop.f32.mrf.mxu0
      %420 = vmatprep.mubr.f32.mxu0 %v311
      %421 = vmatmul.mubr.f32.gmra.mxu0 %v310
      %v422 = vpop.f32.mrf.mxu0
      %v423 = vadd.f32 0.0, %v422
      %v424 = vpop.f32.mrf.mxu0
      %425 = vmatprep.mubr.f32.mxu0 %v313
      %426 = vmatmul.mubr.f32.gmra.mxu0 %v312
      %v427 = vpop.f32.mrf.mxu0
      %v428 = vadd.f32 0.0, %v427
      %v429 = vpop.f32.mrf.mxu0
      %430 = vdwg.mxu0
      %v431 = vld [vmem:[%s4] sm:$0xf]
      %v432 = vld [vmem:[%s5] sm:$0xf]
      %434 = vset.pattern.permute.xlu0 0
      %435 = vperm.xlu0 %434, %v432
      %v436 = vpop.permute.xlu0 %435
      %vm438 = vcmask 261120
      %v440 = vsel %vm438, %v431, 0
      %442 = vmatprep.subr.mxu0 0.0
      %443 = vmatpush1.msra.mxu0 0.0
      %444 = vmatprep.subr.mxu0 0.0
      %445 = vmatpush1.msra.mxu0 0.0
      %446 = vmatprep.subr.mxu0 0.0
      %447 = vmatpush1.msra.mxu0 0.0
      %448 = vmatprep.subr.mxu0 0.0
      %449 = vmatpush1.msra.mxu0 0.0
      %450 = vmatprep.subr.mxu0 0.0
      %451 = vmatpush1.msra.mxu0 0.0
      %452 = vmatprep.subr.mxu0 0.0
      %453 = vmatpush1.msra.mxu0 0.0
      %454 = vmatprep.subr.mxu0 0.0
      %455 = vmatpush1.msra.mxu0 0.0
      %456 = vmatprep.subr.mxu0 0.0
      %457 = vmatpush1.msra.mxu0 0.0
      %458 = vmatprep.subr.mxu0 0.0
      %459 = vmatpush1.msra.mxu0 0.0
      %460 = vmatprep.subr.mxu0 0.0
      %461 = vmatpush1.msra.mxu0 0.0
      %462 = vmatprep.subr.mxu0 0.0
      %463 = vmatpush1.msra.mxu0 0.0
      %464 = vmatprep.subr.mxu0 0.0
      %465 = vmatpush1.msra.mxu0 0.0
      %466 = vmatprep.subr.mxu0 0.0
      %467 = vmatpush1.msra.mxu0 %v428
      %468 = vmatprep.subr.mxu0 0.0
      %469 = vmatpush1.msra.mxu0 %v423
      %470 = vmatprep.subr.mxu0 0.0
      %471 = vmatpush1.msra.mxu0 %v418
      %472 = vmatprep.subr.mxu0 0.0
      %473 = vmatpush1.msra.mxu0 %v413
      %474 = vmatprep.subr.mxu0 0.0
      %475 = vmatpush2.msra.mxu0 0.0
      %476 = vmatprep.subr.mxu0 0.0
      %477 = vmatpush2.msra.mxu0 0.0
      %478 = vmatprep.subr.mxu0 0.0
      %479 = vmatpush2.msra.mxu0 0.0
      %480 = vmatprep.subr.mxu0 0.0
      %481 = vmatpush2.msra.mxu0 0.0
      %482 = vmatprep.subr.mxu0 0.0
      %483 = vmatpush2.msra.mxu0 0.0
      %484 = vmatprep.subr.mxu0 0.0
      %485 = vmatpush2.msra.mxu0 0.0
      %486 = vmatprep.subr.mxu0 0.0
      %487 = vmatpush2.msra.mxu0 0.0
      %488 = vmatprep.subr.mxu0 0.0
      %489 = vmatpush2.msra.mxu0 0.0
      %490 = vmatprep.subr.mxu0 0.0
      %491 = vmatpush2.msra.mxu0 0.0
      %492 = vmatprep.subr.mxu0 0.0
      %493 = vmatpush2.msra.mxu0 0.0
      %494 = vmatprep.subr.mxu0 0.0
      %495 = vmatpush2.msra.mxu0 0.0
      %496 = vmatprep.subr.mxu0 0.0
      %497 = vmatpush2.msra.mxu0 0.0
      %498 = vmatprep.subr.mxu0 0.0
      %499 = vmatpush2.msra.mxu0 0.0
      %500 = vmatprep.subr.mxu0 0.0
      %501 = vmatpush2.msra.mxu0 0.0
      %502 = vmatprep.subr.mxu0 0.0
      %503 = vmatpush2.msra.mxu0 0.0
      %504 = vmatprep.subr.mxu0 0.0
      %505 = vmatpush2.msra.mxu0 0.0
      %506 = vmatprep.mubr.f32.mxu0 0.0
      %507 = vmatmul.mubr.f32.gmra.mxu0 %v440
      %v508 = vpop.f32.mrf.mxu0
      %v509 = vadd.f32 %v436, %v508
      %v510 = vpop.f32.mrf.mxu0
      %511 = vdwg.mxu0
      %v512 = vmax.f32 %v509, 0.0
      %v513 = vld [vmem:[%s6] sm:$0xff]
      %v514 = vld [vmem:[%s6 + $0x8] sm:$0xff]
      %v515 = vld [vmem:[%s6 + $0x10] sm:$0xff]
      %v516 = vld [vmem:[%s6 + $0x18] sm:$0xff]
      %vm517 = vcmask 31744
      %v519 = vsel %vm517, %v513, 0
      %v522 = vsel %vm517, %v514, 0
      %v525 = vsel %vm517, %v515, 0
      %v528 = vsel %vm517, %v516, 0
      %vm530 = vcmask 1043456
      %v532 = vsel %vm530, %v512, 0
      %534 = vmatprep.subr.mxu0 0.0
      %535 = vmatpush1.msra.mxu0 0.0
      %536 = vmatprep.subr.mxu0 0.0
      %537 = vmatpush1.msra.mxu0 0.0
      %538 = vmatprep.subr.mxu0 0.0
      %539 = vmatpush1.msra.mxu0 0.0
      %540 = vmatprep.subr.mxu0 0.0
      %541 = vmatpush1.msra.mxu0 0.0
      %542 = vmatprep.subr.mxu0 0.0
      %543 = vmatpush1.msra.mxu0 0.0
      %544 = vmatprep.subr.mxu0 0.0
      %545 = vmatpush1.msra.mxu0 0.0
      %546 = vmatprep.subr.mxu0 0.0
      %547 = vmatpush1.msra.mxu0 0.0
      %548 = vmatprep.subr.mxu0 0.0
      %549 = vmatpush1.msra.mxu0 0.0
      %550 = vmatprep.subr.mxu0 0.0
      %551 = vmatpush1.msra.mxu0 0.0
      %552 = vmatprep.subr.mxu0 0.0
      %553 = vmatpush1.msra.mxu0 0.0
      %554 = vmatprep.subr.mxu0 0.0
      %555 = vmatpush1.msra.mxu0 0.0
      %556 = vmatprep.subr.mxu0 0.0
      %557 = vmatpush1.msra.mxu0 0.0
      %558 = vmatprep.subr.mxu0 0.0
      %559 = vmatpush1.msra.mxu0 0.0
      %560 = vmatprep.subr.mxu0 0.0
      %561 = vmatpush1.msra.mxu0 0.0
      %562 = vmatprep.subr.mxu0 0.0
      %563 = vmatpush1.msra.mxu0 0.0
      %564 = vmatprep.subr.mxu0 0.0
      %565 = vmatpush1.msra.mxu0 %v532
      %566 = vmatprep.subr.mxu0 0.0
      %567 = vmatpush2.msra.mxu0 0.0
      %568 = vmatprep.subr.mxu0 0.0
      %569 = vmatpush2.msra.mxu0 0.0
      %570 = vmatprep.subr.mxu0 0.0
      %571 = vmatpush2.msra.mxu0 0.0
      %572 = vmatprep.subr.mxu0 0.0
      %573 = vmatpush2.msra.mxu0 0.0
      %574 = vmatprep.subr.mxu0 0.0
      %575 = vmatpush2.msra.mxu0 0.0
      %576 = vmatprep.subr.mxu0 0.0
      %577 = vmatpush2.msra.mxu0 0.0
      %578 = vmatprep.subr.mxu0 0.0
      %579 = vmatpush2.msra.mxu0 0.0
      %580 = vmatprep.subr.mxu0 0.0
      %581 = vmatpush2.msra.mxu0 0.0
      %582 = vmatprep.subr.mxu0 0.0
      %583 = vmatpush2.msra.mxu0 0.0
      %584 = vmatprep.subr.mxu0 0.0
      %585 = vmatpush2.msra.mxu0 0.0
      %586 = vmatprep.subr.mxu0 0.0
      %587 = vmatpush2.msra.mxu0 0.0
      %588 = vmatprep.subr.mxu0 0.0
      %589 = vmatpush2.msra.mxu0 0.0
      %590 = vmatprep.subr.mxu0 0.0
      %591 = vmatpush2.msra.mxu0 0.0
      %592 = vmatprep.subr.mxu0 0.0
      %593 = vmatpush2.msra.mxu0 0.0
      %594 = vmatprep.subr.mxu0 0.0
      %595 = vmatpush2.msra.mxu0 0.0
      %596 = vmatprep.subr.mxu0 0.0
      %597 = vmatpush2.msra.mxu0 0.0
      %598 = vmatprep.mubr.f32.mxu0 0.0
      %599 = vmatmul.mubr.f32.gmra.mxu0 %v519
      %v600 = vpop.f32.mrf.mxu0
      %v601 = vadd.f32 0.0, %v600
      %v602 = vpop.f32.mrf.mxu0
      %603 = vmatprep.mubr.f32.mxu0 0.0
      %604 = vmatmul.mubr.f32.gmra.mxu0 %v522
      %v605 = vpop.f32.mrf.mxu0
      %v606 = vadd.f32 0.0, %v605
      %v607 = vpop.f32.mrf.mxu0
      %608 = vmatprep.mubr.f32.mxu0 0.0
      %609 = vmatmul.mubr.f32.gmra.mxu0 %v525
      %v610 = vpop.f32.mrf.mxu0
      %v611 = vadd.f32 0.0, %v610
      %v612 = vpop.f32.mrf.mxu0
      %613 = vmatprep.mubr.f32.mxu0 0.0
      %614 = vmatmul.mubr.f32.gmra.mxu0 %v528
      %v615 = vpop.f32.mrf.mxu0
      %v616 = vadd.f32 0.0, %v615
      %v617 = vpop.f32.mrf.mxu0
      %618 = vdwg.mxu0
      %v619 = vxor.u32 %v601, 2147483648
      %v620 = vxor.u32 %v606, 2147483648
      %v621 = vxor.u32 %v611, 2147483648
      %v622 = vxor.u32 %v616, 2147483648
      %v623 = vmul.f32 %v619, 1.442695
      %v624 = vpow.pop %v623
      %v625 = vmul.f32 %v620, 1.442695
      %v626 = vpow.pop %v625
      %v627 = vmul.f32 %v621, 1.442695
      %v628 = vpow.pop %v627
      %v629 = vmul.f32 %v622, 1.442695
      %v630 = vpow.pop %v629
      %v631 = vadd.f32 %v624, 1.0
      %v632 = vadd.f32 %v626, 1.0
      %v633 = vadd.f32 %v628, 1.0
      %v634 = vadd.f32 %v630, 1.0
      %v635 = vrcp.pop %v631
      %v636 = vmul.f32 1.0, %v635
      %v637 = vrcp.pop %v632
      %v638 = vmul.f32 1.0, %v637
      %v639 = vrcp.pop %v633
      %v640 = vmul.f32 1.0, %v639
      %v641 = vrcp.pop %v634
      %v642 = vmul.f32 1.0, %v641
      %v643 = vld [vmem:[%s7] sm:$0xff]
      %v644 = vld [vmem:[%s7 + $0x8] sm:$0xff]
      %v645 = vld [vmem:[%s7 + $0x10] sm:$0xff]
      %v646 = vld [vmem:[%s7 + $0x18] sm:$0xff]
      %647 = vrot.lane.b32.xlu0 %v512, 112
      %v648 = vpop.permute.xlu0 %647
      %v650 = vsel %vm517, %v643, 0
      %v653 = vsel %vm517, %v644, 0
      %v656 = vsel %vm517, %v645, 0
      %v659 = vsel %vm517, %v646, 0
      %v661 = vsel %vm530, %v648, 0
      %663 = vmatprep.subr.mxu0 0.0
      %664 = vmatpush1.msra.mxu0 0.0
      %665 = vmatprep.subr.mxu0 0.0
      %666 = vmatpush1.msra.mxu0 0.0
      %667 = vmatprep.subr.mxu0 0.0
      %668 = vmatpush1.msra.mxu0 0.0
      %669 = vmatprep.subr.mxu0 0.0
      %670 = vmatpush1.msra.mxu0 0.0
      %671 = vmatprep.subr.mxu0 0.0
      %672 = vmatpush1.msra.mxu0 0.0
      %673 = vmatprep.subr.mxu0 0.0
      %674 = vmatpush1.msra.mxu0 0.0
      %675 = vmatprep.subr.mxu0 0.0
      %676 = vmatpush1.msra.mxu0 0.0
      %677 = vmatprep.subr.mxu0 0.0
      %678 = vmatpush1.msra.mxu0 0.0
      %679 = vmatprep.subr.mxu0 0.0
      %680 = vmatpush1.msra.mxu0 0.0
      %681 = vmatprep.subr.mxu0 0.0
      %682 = vmatpush1.msra.mxu0 0.0
      %683 = vmatprep.subr.mxu0 0.0
      %684 = vmatpush1.msra.mxu0 0.0
      %685 = vmatprep.subr.mxu0 0.0
      %686 = vmatpush1.msra.mxu0 0.0
      %687 = vmatprep.subr.mxu0 0.0
      %688 = vmatpush1.msra.mxu0 0.0
      %689 = vmatprep.subr.mxu0 0.0
      %690 = vmatpush1.msra.mxu0 0.0
      %691 = vmatprep.subr.mxu0 0.0
      %692 = vmatpush1.msra.mxu0 0.0
      %693 = vmatprep.subr.mxu0 0.0
      %694 = vmatpush1.msra.mxu0 %v661
      %695 = vmatprep.subr.mxu0 0.0
      %696 = vmatpush2.msra.mxu0 0.0
      %697 = vmatprep.subr.mxu0 0.0
      %698 = vmatpush2.msra.mxu0 0.0
      %699 = vmatprep.subr.mxu0 0.0
      %700 = vmatpush2.msra.mxu0 0.0
      %701 = vmatprep.subr.mxu0 0.0
      %702 = vmatpush2.msra.mxu0 0.0
      %703 = vmatprep.subr.mxu0 0.0
      %704 = vmatpush2.msra.mxu0 0.0
      %705 = vmatprep.subr.mxu0 0.0
      %706 = vmatpush2.msra.mxu0 0.0
      %707 = vmatprep.subr.mxu0 0.0
      %708 = vmatpush2.msra.mxu0 0.0
      %709 = vmatprep.subr.mxu0 0.0
      %710 = vmatpush2.msra.mxu0 0.0
      %711 = vmatprep.subr.mxu0 0.0
      %712 = vmatpush2.msra.mxu0 0.0
      %713 = vmatprep.subr.mxu0 0.0
      %714 = vmatpush2.msra.mxu0 0.0
      %715 = vmatprep.subr.mxu0 0.0
      %716 = vmatpush2.msra.mxu0 0.0
      %717 = vmatprep.subr.mxu0 0.0
      %718 = vmatpush2.msra.mxu0 0.0
      %719 = vmatprep.subr.mxu0 0.0
      %720 = vmatpush2.msra.mxu0 0.0
      %721 = vmatprep.subr.mxu0 0.0
      %722 = vmatpush2.msra.mxu0 0.0
      %723 = vmatprep.subr.mxu0 0.0
      %724 = vmatpush2.msra.mxu0 0.0
      %725 = vmatprep.subr.mxu0 0.0
      %726 = vmatpush2.msra.mxu0 0.0
      %727 = vmatprep.mubr.f32.mxu0 0.0
      %728 = vmatmul.mubr.f32.gmra.mxu0 %v650
      %v729 = vpop.f32.mrf.mxu0
      %v730 = vadd.f32 0.0, %v729
      %v731 = vpop.f32.mrf.mxu0
      %732 = vmatprep.mubr.f32.mxu0 0.0
      %733 = vmatmul.mubr.f32.gmra.mxu0 %v653
      %v734 = vpop.f32.mrf.mxu0
      %v735 = vadd.f32 0.0, %v734
      %v736 = vpop.f32.mrf.mxu0
      %737 = vmatprep.mubr.f32.mxu0 0.0
      %738 = vmatmul.mubr.f32.gmra.mxu0 %v656
      %v739 = vpop.f32.mrf.mxu0
      %v740 = vadd.f32 0.0, %v739
      %v741 = vpop.f32.mrf.mxu0
      %742 = vmatprep.mubr.f32.mxu0 0.0
      %743 = vmatmul.mubr.f32.gmra.mxu0 %v659
      %v744 = vpop.f32.mrf.mxu0
      %v745 = vadd.f32 0.0, %v744
      %v746 = vpop.f32.mrf.mxu0
      %747 = vdwg.mxu0
      %v748 = vxor.u32 %v730, 2147483648
      %v749 = vxor.u32 %v735, 2147483648
      %v750 = vxor.u32 %v740, 2147483648
      %v751 = vxor.u32 %v745, 2147483648
      %v752 = vmul.f32 %v748, 1.442695
      %v753 = vpow.pop %v752
      %v754 = vmul.f32 %v749, 1.442695
      %v755 = vpow.pop %v754
      %v756 = vmul.f32 %v750, 1.442695
      %v757 = vpow.pop %v756
      %v758 = vmul.f32 %v751, 1.442695
      %v759 = vpow.pop %v758
      %v760 = vadd.f32 %v753, 1.0
      %v761 = vadd.f32 %v755, 1.0
      %v762 = vadd.f32 %v757, 1.0
      %v763 = vadd.f32 %v759, 1.0
      %v764 = vrcp.pop %v760
      %v765 = vmul.f32 1.0, %v764
      %v766 = vrcp.pop %v761
      %v767 = vmul.f32 1.0, %v766
      %v768 = vrcp.pop %v762
      %v769 = vmul.f32 1.0, %v768
      %v770 = vrcp.pop %v763
      %v771 = vmul.f32 1.0, %v770
      %v772 = vld [vmem:[%s2] sm:$0xff]
      %v773 = vld [vmem:[%s2 + $0x8] sm:$0xff]
      %v774 = vld [vmem:[%s2 + $0x10] sm:$0xff]
      %v775 = vld [vmem:[%s2 + $0x18] sm:$0xff]
      %vm776 = vcmask 130048
      %v778 = vsel %vm776, %v636, 0
      %v781 = vsel %vm776, %v638, 0
      %v784 = vsel %vm776, %v640, 0
      %v787 = vsel %vm776, %v642, 0
      %789 = vmatprep.subr.mxu0 0.0
      %790 = vmatpush1.msra.mxu0 0.0
      %791 = vmatprep.subr.mxu0 0.0
      %792 = vmatpush1.msra.mxu0 0.0
      %793 = vmatprep.subr.mxu0 0.0
      %794 = vmatpush1.msra.mxu0 0.0
      %795 = vmatprep.subr.mxu0 0.0
      %796 = vmatpush1.msra.mxu0 0.0
      %797 = vmatprep.subr.mxu0 0.0
      %798 = vmatpush1.msra.mxu0 0.0
      %799 = vmatprep.subr.mxu0 0.0
      %800 = vmatpush1.msra.mxu0 0.0
      %801 = vmatprep.subr.mxu0 0.0
      %802 = vmatpush1.msra.mxu0 0.0
      %803 = vmatprep.subr.mxu0 0.0
      %804 = vmatpush1.msra.mxu0 0.0
      %805 = vmatprep.subr.mxu0 0.0
      %806 = vmatpush1.msra.mxu0 0.0
      %807 = vmatprep.subr.mxu0 0.0
      %808 = vmatpush1.msra.mxu0 0.0
      %809 = vmatprep.subr.mxu0 0.0
      %810 = vmatpush1.msra.mxu0 0.0
      %811 = vmatprep.subr.mxu0 0.0
      %812 = vmatpush1.msra.mxu0 0.0
      %813 = vmatprep.subr.mxu0 0.0
      %814 = vmatpush1.msra.mxu0 0.0
      %815 = vmatprep.subr.mxu0 0.0
      %816 = vmatpush1.msra.mxu0 0.0
      %817 = vmatprep.subr.mxu0 %v775
      %818 = vmatpush1.msra.mxu0 %v774
      %819 = vmatprep.subr.mxu0 %v773
      %820 = vmatpush1.msra.mxu0 %v772
      %821 = vmatprep.subr.mxu0 0.0
      %822 = vmatpush2.msra.mxu0 0.0
      %823 = vmatprep.subr.mxu0 0.0
      %824 = vmatpush2.msra.mxu0 0.0
      %825 = vmatprep.subr.mxu0 0.0
      %826 = vmatpush2.msra.mxu0 0.0
      %827 = vmatprep.subr.mxu0 0.0
      %828 = vmatpush2.msra.mxu0 0.0
      %829 = vmatprep.subr.mxu0 0.0
      %830 = vmatpush2.msra.mxu0 0.0
      %831 = vmatprep.subr.mxu0 0.0
      %832 = vmatpush2.msra.mxu0 0.0
      %833 = vmatprep.subr.mxu0 0.0
      %834 = vmatpush2.msra.mxu0 0.0
      %835 = vmatprep.subr.mxu0 0.0
      %836 = vmatpush2.msra.mxu0 0.0
      %837 = vmatprep.subr.mxu0 0.0
      %838 = vmatpush2.msra.mxu0 0.0
      %839 = vmatprep.subr.mxu0 0.0
      %840 = vmatpush2.msra.mxu0 0.0
      %841 = vmatprep.subr.mxu0 0.0
      %842 = vmatpush2.msra.mxu0 0.0
      %843 = vmatprep.subr.mxu0 0.0
      %844 = vmatpush2.msra.mxu0 0.0
      %845 = vmatprep.subr.mxu0 0.0
      %846 = vmatpush2.msra.mxu0 0.0
      %847 = vmatprep.subr.mxu0 0.0
      %848 = vmatpush2.msra.mxu0 0.0
      %849 = vmatprep.subr.mxu0 0.0
      %850 = vmatpush2.msra.mxu0 0.0
      %851 = vmatprep.subr.mxu0 0.0
      %852 = vmatpush2.msra.mxu0 0.0
      %853 = vmatprep.mubr.f32.mxu0 0.0
      %854 = vmatmul.mubr.f32.gmra.mxu0 %v778
      %v855 = vpop.f32.mrf.mxu0
      %v856 = vadd.f32 0.0, %v855
      %v857 = vpop.f32.mrf.mxu0
      %v858 = vadd.f32 0.0, %v857
      %859 = vmatprep.mubr.f32.mxu0 0.0
      %860 = vmatmul.mubr.f32.gmra.mxu0 %v781
      %v861 = vpop.f32.mrf.mxu0
      %v862 = vadd.f32 0.0, %v861
      %v863 = vpop.f32.mrf.mxu0
      %v864 = vadd.f32 0.0, %v863
      %865 = vmatprep.mubr.f32.mxu0 0.0
      %866 = vmatmul.mubr.f32.gmra.mxu0 %v784
      %v867 = vpop.f32.mrf.mxu0
      %v868 = vadd.f32 0.0, %v867
      %v869 = vpop.f32.mrf.mxu0
      %v870 = vadd.f32 0.0, %v869
      %871 = vmatprep.mubr.f32.mxu0 0.0
      %872 = vmatmul.mubr.f32.gmra.mxu0 %v787
      %v873 = vpop.f32.mrf.mxu0
      %v874 = vadd.f32 0.0, %v873
      %v875 = vpop.f32.mrf.mxu0
      %v876 = vadd.f32 0.0, %v875
      %877 = vdwg.mxu0
      %v878 = vld [vmem:[%s3] sm:$0xff]
      %v879 = vld [vmem:[%s3 + $0x8] sm:$0xff]
      %v880 = vld [vmem:[%s3 + $0x10] sm:$0xff]
      %v881 = vld [vmem:[%s3 + $0x18] sm:$0xff]
      %v883 = vsel %vm776, %v765, 0
      %v886 = vsel %vm776, %v767, 0
      %v889 = vsel %vm776, %v769, 0
      %v892 = vsel %vm776, %v771, 0
      %894 = vmatprep.subr.mxu0 0.0
      %895 = vmatpush1.msra.mxu0 0.0
      %896 = vmatprep.subr.mxu0 0.0
      %897 = vmatpush1.msra.mxu0 0.0
      %898 = vmatprep.subr.mxu0 0.0
      %899 = vmatpush1.msra.mxu0 0.0
      %900 = vmatprep.subr.mxu0 0.0
      %901 = vmatpush1.msra.mxu0 0.0
      %902 = vmatprep.subr.mxu0 0.0
      %903 = vmatpush1.msra.mxu0 0.0
      %904 = vmatprep.subr.mxu0 0.0
      %905 = vmatpush1.msra.mxu0 0.0
      %906 = vmatprep.subr.mxu0 0.0
      %907 = vmatpush1.msra.mxu0 0.0
      %908 = vmatprep.subr.mxu0 0.0
      %909 = vmatpush1.msra.mxu0 0.0
      %910 = vmatprep.subr.mxu0 0.0
      %911 = vmatpush1.msra.mxu0 0.0
      %912 = vmatprep.subr.mxu0 0.0
      %913 = vmatpush1.msra.mxu0 0.0
      %914 = vmatprep.subr.mxu0 0.0
      %915 = vmatpush1.msra.mxu0 0.0
      %916 = vmatprep.subr.mxu0 0.0
      %917 = vmatpush1.msra.mxu0 0.0
      %918 = vmatprep.subr.mxu0 0.0
      %919 = vmatpush1.msra.mxu0 0.0
      %920 = vmatprep.subr.mxu0 0.0
      %921 = vmatpush1.msra.mxu0 0.0
      %922 = vmatprep.subr.mxu0 %v881
      %923 = vmatpush1.msra.mxu0 %v880
      %924 = vmatprep.subr.mxu0 %v879
      %925 = vmatpush1.msra.mxu0 %v878
      %926 = vmatprep.subr.mxu0 0.0
      %927 = vmatpush2.msra.mxu0 0.0
      %928 = vmatprep.subr.mxu0 0.0
      %929 = vmatpush2.msra.mxu0 0.0
      %930 = vmatprep.subr.mxu0 0.0
      %931 = vmatpush2.msra.mxu0 0.0
      %932 = vmatprep.subr.mxu0 0.0
      %933 = vmatpush2.msra.mxu0 0.0
      %934 = vmatprep.subr.mxu0 0.0
      %935 = vmatpush2.msra.mxu0 0.0
      %936 = vmatprep.subr.mxu0 0.0
      %937 = vmatpush2.msra.mxu0 0.0
      %938 = vmatprep.subr.mxu0 0.0
      %939 = vmatpush2.msra.mxu0 0.0
      %940 = vmatprep.subr.mxu0 0.0
      %941 = vmatpush2.msra.mxu0 0.0
      %942 = vmatprep.subr.mxu0 0.0
      %943 = vmatpush2.msra.mxu0 0.0
      %944 = vmatprep.subr.mxu0 0.0
      %945 = vmatpush2.msra.mxu0 0.0
      %946 = vmatprep.subr.mxu0 0.0
      %947 = vmatpush2.msra.mxu0 0.0
      %948 = vmatprep.subr.mxu0 0.0
      %949 = vmatpush2.msra.mxu0 0.0
      %950 = vmatprep.subr.mxu0 0.0
      %951 = vmatpush2.msra.mxu0 0.0
      %952 = vmatprep.subr.mxu0 0.0
      %953 = vmatpush2.msra.mxu0 0.0
      %954 = vmatprep.subr.mxu0 0.0
      %955 = vmatpush2.msra.mxu0 0.0
      %956 = vmatprep.subr.mxu0 0.0
      %957 = vmatpush2.msra.mxu0 0.0
      %958 = vmatprep.mubr.f32.mxu0 0.0
      %959 = vmatmul.mubr.f32.gmra.mxu0 %v883
      %v960 = vpop.f32.mrf.mxu0
      %v961 = vadd.f32 0.0, %v960
      %v962 = vpop.f32.mrf.mxu0
      %v963 = vadd.f32 0.0, %v962
      %964 = vmatprep.mubr.f32.mxu0 0.0
      %965 = vmatmul.mubr.f32.gmra.mxu0 %v886
      %v966 = vpop.f32.mrf.mxu0
      %v967 = vadd.f32 0.0, %v966
      %v968 = vpop.f32.mrf.mxu0
      %v969 = vadd.f32 0.0, %v968
      %970 = vmatprep.mubr.f32.mxu0 0.0
      %971 = vmatmul.mubr.f32.gmra.mxu0 %v889
      %v972 = vpop.f32.mrf.mxu0
      %v973 = vadd.f32 0.0, %v972
      %v974 = vpop.f32.mrf.mxu0
      %v975 = vadd.f32 0.0, %v974
      %976 = vmatprep.mubr.f32.mxu0 0.0
      %977 = vmatmul.mubr.f32.gmra.mxu0 %v892
      %v978 = vpop.f32.mrf.mxu0
      %v979 = vadd.f32 0.0, %v978
      %v980 = vpop.f32.mrf.mxu0
      %v981 = vadd.f32 0.0, %v980
      %982 = vdwg.mxu0
      %v983 = vmul.f32 %v306, %v856
      %v984 = vmul.f32 %v307, %v858
      %v985 = vmul.f32 %v308, %v862
      %v986 = vmul.f32 %v309, %v864
      %v987 = vmul.f32 %v310, %v868
      %v988 = vmul.f32 %v311, %v870
      %v989 = vmul.f32 %v312, %v874
      %v990 = vmul.f32 %v313, %v876
      %v991 = vmul.f32 %v983, %v961
      %v992 = vmul.f32 %v984, %v963
      %v993 = vmul.f32 %v985, %v967
      %v994 = vmul.f32 %v986, %v969
      %v995 = vmul.f32 %v987, %v973
      %v996 = vmul.f32 %v988, %v975
      %v997 = vmul.f32 %v989, %v979
      %v998 = vmul.f32 %v990, %v981
      %999 = vst [vmem:[%s305] sm:$0xff] %v991
      %1000 = vst [vmem:[%s305 + $0x8] sm:$0xff] %v992
      %1001 = vst [vmem:[%s305 + $0x10] sm:$0xff] %v993
      %1002 = vst [vmem:[%s305 + $0x18] sm:$0xff] %v994
      %1003 = vst [vmem:[%s305 + $0x20] sm:$0xff] %v995
      %1004 = vst [vmem:[%s305 + $0x28] sm:$0xff] %v996
      %1005 = vst [vmem:[%s305 + $0x30] sm:$0xff] %v997
      %1006 = vst [vmem:[%s305 + $0x38] sm:$0xff] %v998
      %p1007 = scmp.lt.s32.totalorder %s19, 1
      %s1008 = scalar_select %p1007, %s19, 1
      %s1009 = smul.addr %s1008, 8
      %s1010 = smul.addr %s1009, 8
      %s1011 = scalar_lea.vmem %s8, %s1010
      // Predicated region
      $region53: #{ca_block_pallas.1} parent=51 // pred_check
        %p1012 = pneg %p210
      $region54: #{ca_block_pallas.1} parent=51 // pred_check_branch
        %1014 = sbr.rel (%p1012) target = $region56
      $region55: #{ca_block_pallas.1} parent=51 // pred_region
        _
      $region56: #{ca_block_pallas.1} parent=51 // pred_fallthru
        _
    $region52: #{ca_block_pallas.1} parent=5 // pred_fallthru
      _
    %p1015 = scmp.le.s32.totalorder 2, %s14
    // Predicated region
    $region57: #{ca_block_pallas.1} parent=5 // pred_check
      %p1016 = pneg %p1015
    $region58: #{ca_block_pallas.1} parent=5 // pred_check_branch
      %1018 = sbr.rel (%p1016) target = $region60
    $region59: #{ca_block_pallas.1} parent=5 // pred_region
      %s1019 = ssub.s32 %s14, 2
      // Predicated region
      $region61: #{ca_block_pallas.1} parent=59 // pred_check
        %p1020 = pneg %p216
      $region62: #{ca_block_pallas.1} parent=59 // pred_check_branch
        %1022 = sbr.rel (%p1020) target = $region64
      $region63: #{ca_block_pallas.1} parent=59 // pred_region
        %p1023 = scmp.lt.s32.totalorder %s20, 1
        %s1024 = scalar_select %p1023, %s20, 1
        %s1025 = smul.addr %s1024, 8
        %s1026 = smul.addr %s1025, 8
        %s1027 = scalar_lea.vmem %s8, %s1026
      $region64: #{ca_block_pallas.1} parent=59 // pred_fallthru
        _
    $region60: #{ca_block_pallas.1} parent=5 // pred_fallthru
      _
  $region6: #{ca_block_pallas.1} parent=0 // loop_footer
    %s18 = sadd.s32 1, %s14
  $region7: #{ca_block_pallas.1} parent=0 // loop_footer_branch
    %13 = sbr.rel target = $region3
  $region8: #{ca_block_pallas.1} parent=0 // loop_exit
    _

</llo_original>
